<compile_context>
chip_gen: v7x
topology: tpu7x:2x2x1
jax: 0.10.0
libtpu: 0.0.40
codegen_flags: <defaults>
</compile_context>

<pallas_src>
import jax
import jax.numpy as jnp
from jax import lax
from jax.experimental import pallas as pl
from jax.experimental.pallas import tpu as pltpu


def _lstm_fc_kernel(x_ref, wih_ref, whh_ref, b_ref, wfc_ref, bfc_ref, out_ref):
    """Single-layer LSTM recurrence over all timesteps + final Linear(H, 1).

    x_ref   : (Bb, T)   batch-major input block (input_size == 1, squeezed)
    wih_ref : (1, 4H)   input->gates weights (gate order i,f,g,o); g cols x2
    whh_ref : (H, 4H)   hidden->gates weights (transposed), bf16; g cols x2
    b_ref   : (1, 4H)   b_ih + b_hh; g entries x2
    wfc_ref : (1, H)    fc weight (PyTorch layout)
    bfc_ref : (1, 1)    fc bias
    out_ref : (1, Bb)   fc(last hidden state), batch on lanes (lane-dense)
    """
    Bb, T = x_ref.shape
    H = whh_ref.shape[0]

    x_bt = x_ref[...]                  # (Bb, T)  f32
    wih = wih_ref[...]                 # (1, 4H)  f32 (g-gate columns pre-scaled x2)
    b = b_ref[...]                     # (1, 4H)  f32 (g-gate entries pre-scaled x2)
    whh = whh_ref[...]                 # (H, 4H)  bf16 MXU operand

    # Lane mask for the 'g' gate: lanes [2H, 3H) use tanh(z) = 2*sigmoid(2z)-1
    # (the x2 is already folded into the weights/bias), others use sigmoid.
    lane = lax.broadcasted_iota(jnp.int32, (Bb, 4 * H), 1)
    g_lanes = (lane >= 2 * H) & (lane < 3 * H)

    h = jnp.zeros((Bb, H), jnp.float32)
    c = jnp.zeros((Bb, H), jnp.float32)

    # T is static and small: fully unroll the serial recurrence.  The input
    # term (x_t * wih + b) has no dependence on (h, c), so the scheduler can
    # compute it for all timesteps in parallel with the recurrent chain.
    for t in range(T):
        x_t = x_bt[:, t:t + 1]                                   # (Bb, 1), static slice
        gates = x_t * wih + b + jnp.dot(h.astype(jnp.bfloat16), whh,
                                        preferred_element_type=jnp.float32)
        # Single EUP pass per step (sigmoid); tanh recovered via identity.
        sig = jax.nn.sigmoid(gates)
        act = jnp.where(g_lanes, 2.0 * sig - 1.0, sig)
        i_g = act[:, 0 * H:1 * H]
        f_g = act[:, 1 * H:2 * H]
        g_g = act[:, 2 * H:3 * H]
        o_g = act[:, 3 * H:4 * H]
        c = f_g * c + i_g * g_g
        h = o_g * jnp.tanh(c)

    # fc: (1, H) contracted against h (Bb, H) on the H axis -> (1, Bb).
    fc = lax.dot_general(wfc_ref[...], h, (((1,), (1,)), ((), ())),
                         preferred_element_type=jnp.float32)
    out_ref[...] = fc + bfc_ref[...]


def _round_up(n, m):
    return ((n + m - 1) // m) * m


def pv_model_forward(x_btf, params):
    """x_btf: (B, T, 1) float32, batch-first (PyTorch convention).

    Returns (B,) — matching `self.fc(output[:, -1, :]).squeeze()` for B > 1.
    """
    w_ih, w_hh, b_ih, b_hh, w_fc, b_fc = (
        params["w_ih"], params["w_hh"], params["b_ih"], params["b_hh"],
        params["w_fc"], params["b_fc"])

    B, T, _ = x_btf.shape
    H = w_hh.shape[1]

    # Batch tile selection (see header).
    if B <= 128:
        B_BLOCK = _round_up(B, 8)        # one block; block dims == array dims
    elif B <= 1024:
        B_BLOCK = 128                    # >=2 blocks (both TCs on v7x), 128-lane out
    else:
        B_BLOCK = 256                    # MXU-native M tile on v6e/v7x
    B_pad = _round_up(B, B_BLOCK)
    nb = B_pad // B_BLOCK

    # ---- parameter / input plumbing in plain JAX ---------------------------
    # Fold x2 into the 'g' gate (columns [2H, 3H)) so the kernel can use
    # tanh(z) = 2*sigmoid(2z) - 1 with a single sigmoid pass.
    g_scale = jnp.concatenate([jnp.ones((2 * H,), jnp.float32),
                               jnp.full((H,), 2.0, jnp.float32),
                               jnp.ones((H,), jnp.float32)]).reshape(1, 4 * H)

    x_bt = x_btf[..., 0].astype(jnp.float32)                      # (B, T) dense
    if B_pad != B:
        x_bt = jnp.pad(x_bt, ((0, B_pad - B), (0, 0)))            # (B_pad, T)

    wih_t = jnp.transpose(w_ih).astype(jnp.float32) * g_scale     # (1, 4H)
    whh_t = (jnp.transpose(w_hh).astype(jnp.float32) * g_scale    # (H, 4H) bf16
             ).astype(jnp.bfloat16)
    b_sum = ((b_ih + b_hh).reshape(1, 4 * H).astype(jnp.float32)  # (1, 4H)
             * g_scale)
    wfc = w_fc.reshape(1, H).astype(jnp.float32)                  # (1, H)
    bfc = b_fc.reshape(1, 1).astype(jnp.float32)                  # (1, 1)

    out = pl.pallas_call(
        _lstm_fc_kernel,
        out_shape=jax.ShapeDtypeStruct((1, B_pad), jnp.float32),
        grid=(nb,),
        in_specs=[
            pl.BlockSpec((B_BLOCK, T), lambda i: (i, 0)),         # x (Bb, T)
            pl.BlockSpec((1, 4 * H), lambda i: (0, 0)),           # wih
            pl.BlockSpec((H, 4 * H), lambda i: (0, 0)),           # whh (bf16)
            pl.BlockSpec((1, 4 * H), lambda i: (0, 0)),           # b_ih + b_hh
            pl.BlockSpec((1, H), lambda i: (0, 0)),               # wfc
            pl.BlockSpec((1, 1), lambda i: (0, 0)),               # bfc
        ],
        out_specs=pl.BlockSpec((1, B_BLOCK), lambda i: (0, i)),   # lane-dense out
        compiler_params=pltpu.CompilerParams(
            dimension_semantics=("parallel",)),
    )(x_bt, wih_t, whh_t, b_sum, wfc, bfc)

    return out[0, :B]


def init_params(key, hidden_size):
    """Deterministic PyTorch-style init: uniform(-1/sqrt(H), 1/sqrt(H))."""
    H = hidden_size
    k = 1.0 / jnp.sqrt(jnp.float32(H))
    keys = jax.random.split(key, 6)
    u = lambda kk, shape: jax.random.uniform(kk, shape, jnp.float32, -k, k)
    return {
        "w_ih": u(keys[0], (4 * H, 1)),    # lstm.weight_ih_l0
        "w_hh": u(keys[1], (4 * H, H)),    # lstm.weight_hh_l0
        "b_ih": u(keys[2], (4 * H,)),      # lstm.bias_ih_l0
        "b_hh": u(keys[3], (4 * H,)),      # lstm.bias_hh_l0
        "w_fc": u(keys[4], (1, H)),        # fc.weight
        "b_fc": u(keys[5], (1,)),          # fc.bias
    }


def _reference_forward(x_btf, params):
    """Pure-JAX f32 reference of the PyTorch forward (correctness check)."""
    w_ih, w_hh = params["w_ih"], params["w_hh"]
    b_ih, b_hh = params["b_ih"], params["b_hh"]
    w_fc, b_fc = params["w_fc"], params["b_fc"]
    B, T, _ = x_btf.shape
    H = w_hh.shape[1]
    h = jnp.zeros((B, H), jnp.float32)
    c = jnp.zeros((B, H), jnp.float32)
    for t in range(T):
        x_t = x_btf[:, t, :]                                # (B, 1)
        gates = x_t @ w_ih.T + h @ w_hh.T + b_ih + b_hh     # (B, 4H)
        i_g = jax.nn.sigmoid(gates[:, 0 * H:1 * H])
        f_g = jax.nn.sigmoid(gates[:, 1 * H:2 * H])
        g_g = jnp.tanh(gates[:, 2 * H:3 * H])
        o_g = jax.nn.sigmoid(gates[:, 3 * H:4 * H])
        c = f_g * c + i_g * g_g
        h = o_g * jnp.tanh(c)
    return (h @ w_fc.T + b_fc)[:, 0]


if __name__ == "__main__":
    B, T, H = 2, 8, 32   # batch, window_size (seq len), hidden_size

    key = jax.random.PRNGKey(0)
    k_x, k_p = jax.random.split(key)
    x = jax.random.normal(k_x, (B, T, 1), jnp.float32)
    params = init_params(k_p, H)

    y = pv_model_forward(x, params)
    y = jax.block_until_ready(y)

    y_ref = _reference_forward(x, params)
    assert y.shape == (B,)
    # Recurrent matmul uses bf16 MXU operands (f32 accumulate / f32 state),
    # so tolerance is loosened relative to the all-f32 reference.
    assert jnp.allclose(y, y_ref, atol=1e-2, rtol=1e-2), (y, y_ref)

    print("KERNEL_OK")
</pallas_src>

<mosaic_0001>
module attributes {stable_mosaic.version = 11 : i64} {
  func.func @_lstm_fc_kernel(%arg0: i32, %arg1: memref<8x8xf32, #tpu.memory_space<vmem>>, %arg2: memref<1x128xf32, #tpu.memory_space<vmem>>, %arg3: memref<32x128xbf16, #tpu.memory_space<vmem>>, %arg4: memref<1x128xf32, #tpu.memory_space<vmem>>, %arg5: memref<1x32xf32, #tpu.memory_space<vmem>>, %arg6: memref<1x1xf32, #tpu.memory_space<vmem>>, %arg7: memref<1x8xf32, #tpu.memory_space<vmem>>) attributes {dimension_semantics = [#tpu.dimension_semantics<parallel>], iteration_bounds = array<i64: 1>, scalar_prefetch = 0 : i64, scratch_operands = 0 : i64, tpu.core_type = #tpu.core_type<tc>, window_params = [{transform_indices = @transform_0, window_bounds = array<i64: 8, 8>}, {pipeline_mode = #tpu.pipeline_mode<synchronous>, transform_indices = @transform_1, window_bounds = array<i64: 1, 128>}, {pipeline_mode = #tpu.pipeline_mode<synchronous>, transform_indices = @transform_2, window_bounds = array<i64: 32, 128>}, {pipeline_mode = #tpu.pipeline_mode<synchronous>, transform_indices = @transform_3, window_bounds = array<i64: 1, 128>}, {pipeline_mode = #tpu.pipeline_mode<synchronous>, transform_indices = @transform_4, window_bounds = array<i64: 1, 32>}, {pipeline_mode = #tpu.pipeline_mode<synchronous>, transform_indices = @transform_5, window_bounds = array<i64: 1, 1>}, {transform_indices = @transform_6, window_bounds = array<i64: 1, 8>}]} {
    %c0 = arith.constant 0 : index
    %c0_0 = arith.constant 0 : index
    %0 = vector.load %arg1[%c0, %c0_0] : memref<8x8xf32, #tpu.memory_space<vmem>>, vector<8x8xf32>
    %c0_1 = arith.constant 0 : index
    %c0_2 = arith.constant 0 : index
    %1 = vector.load %arg2[%c0_1, %c0_2] : memref<1x128xf32, #tpu.memory_space<vmem>>, vector<1x128xf32>
    %c0_3 = arith.constant 0 : index
    %c0_4 = arith.constant 0 : index
    %2 = vector.load %arg4[%c0_3, %c0_4] : memref<1x128xf32, #tpu.memory_space<vmem>>, vector<1x128xf32>
    %c0_5 = arith.constant 0 : index
    %c0_6 = arith.constant 0 : index
    %3 = vector.load %arg3[%c0_5, %c0_6] : memref<32x128xbf16, #tpu.memory_space<vmem>>, vector<32x128xbf16>
    %4 = tpu.iota {dimensions = array<i32: 1>} : vector<8x128xi32>
    %c64_i32 = arith.constant 64 : i32
    %5 = vector.broadcast %c64_i32 : i32 to vector<8x128xi32>
    %6 = arith.cmpi sge, %4, %5 : vector<8x128xi32>
    %c96_i32 = arith.constant 96 : i32
    %7 = vector.broadcast %c96_i32 : i32 to vector<8x128xi32>
    %8 = arith.cmpi slt, %4, %7 : vector<8x128xi32>
    %9 = arith.andi %6, %8 : vector<8x128xi1>
    %cst = arith.constant 0.000000e+00 : f32
    %10 = vector.broadcast %cst : f32 to vector<8x32xf32>
    %cst_7 = arith.constant 0.000000e+00 : f32
    %11 = vector.broadcast %cst_7 : f32 to vector<8x32xf32>
    %12 = vector.extract_strided_slice %0 {offsets = [0, 0], sizes = [8, 1], strides = [1, 1]} : vector<8x8xf32> to vector<8x1xf32>
    %13 = vector.broadcast %12 : vector<8x1xf32> to vector<8x128xf32>
    %14 = vector.broadcast %1 : vector<1x128xf32> to vector<8x128xf32>
    %15 = arith.mulf %13, %14 : vector<8x128xf32>
    %16 = vector.broadcast %2 : vector<1x128xf32> to vector<8x128xf32>
    %17 = arith.addf %15, %16 : vector<8x128xf32>
    %18 = arith.truncf %10 : vector<8x32xf32> to vector<8x32xbf16>
    %cst_8 = arith.constant dense<0.000000e+00> : vector<8x128xf32>
    %19 = tpu.matmul %18, %3, %cst_8 {dimension_numbers = #tpu.dot_dimension_numbers<[1], [0], [0], [1], [0, 0, 1, 1], [], []>} : vector<8x32xbf16>, vector<32x128xbf16>, vector<8x128xf32> -> vector<8x128xf32>
    %20 = arith.addf %17, %19 : vector<8x128xf32>
    %21 = arith.negf %20 : vector<8x128xf32>
    %22 = math.exp %21 : vector<8x128xf32>
    %cst_9 = arith.constant 1.000000e+00 : f32
    %23 = vector.broadcast %cst_9 : f32 to vector<8x128xf32>
    %24 = arith.addf %23, %22 : vector<8x128xf32>
    %25 = arith.divf %23, %24 : vector<8x128xf32>
    %cst_10 = arith.constant 2.000000e+00 : f32
    %26 = vector.broadcast %cst_10 : f32 to vector<8x128xf32>
    %27 = arith.mulf %26, %25 : vector<8x128xf32>
    %cst_11 = arith.constant 1.000000e+00 : f32
    %28 = vector.broadcast %cst_11 : f32 to vector<8x128xf32>
    %29 = arith.subf %27, %28 : vector<8x128xf32>
    %30 = arith.select %9, %29, %25 : vector<8x128xi1>, vector<8x128xf32>
    %31 = vector.extract_strided_slice %30 {offsets = [0, 0], sizes = [8, 32], strides = [1, 1]} : vector<8x128xf32> to vector<8x32xf32>
    %32 = vector.extract_strided_slice %30 {offsets = [0, 32], sizes = [8, 32], strides = [1, 1]} : vector<8x128xf32> to vector<8x32xf32>
    %33 = vector.extract_strided_slice %30 {offsets = [0, 64], sizes = [8, 32], strides = [1, 1]} : vector<8x128xf32> to vector<8x32xf32>
    %34 = vector.extract_strided_slice %30 {offsets = [0, 96], sizes = [8, 32], strides = [1, 1]} : vector<8x128xf32> to vector<8x32xf32>
    %35 = arith.mulf %32, %11 : vector<8x32xf32>
    %36 = arith.mulf %31, %33 : vector<8x32xf32>
    %37 = arith.addf %35, %36 : vector<8x32xf32>
    %38 = math.tanh %37 : vector<8x32xf32>
    %39 = arith.mulf %34, %38 : vector<8x32xf32>
    %40 = vector.extract_strided_slice %0 {offsets = [0, 1], sizes = [8, 1], strides = [1, 1]} : vector<8x8xf32> to vector<8x1xf32>
    %41 = vector.broadcast %40 : vector<8x1xf32> to vector<8x128xf32>
    %42 = vector.broadcast %1 : vector<1x128xf32> to vector<8x128xf32>
    %43 = arith.mulf %41, %42 : vector<8x128xf32>
    %44 = vector.broadcast %2 : vector<1x128xf32> to vector<8x128xf32>
    %45 = arith.addf %43, %44 : vector<8x128xf32>
    %46 = arith.truncf %39 : vector<8x32xf32> to vector<8x32xbf16>
    %cst_12 = arith.constant dense<0.000000e+00> : vector<8x128xf32>
    %47 = tpu.matmul %46, %3, %cst_12 {dimension_numbers = #tpu.dot_dimension_numbers<[1], [0], [0], [1], [0, 0, 1, 1], [], []>} : vector<8x32xbf16>, vector<32x128xbf16>, vector<8x128xf32> -> vector<8x128xf32>
    %48 = arith.addf %45, %47 : vector<8x128xf32>
    %49 = arith.negf %48 : vector<8x128xf32>
    %50 = math.exp %49 : vector<8x128xf32>
    %cst_13 = arith.constant 1.000000e+00 : f32
    %51 = vector.broadcast %cst_13 : f32 to vector<8x128xf32>
    %52 = arith.addf %51, %50 : vector<8x128xf32>
    %53 = arith.divf %51, %52 : vector<8x128xf32>
    %cst_14 = arith.constant 2.000000e+00 : f32
    %54 = vector.broadcast %cst_14 : f32 to vector<8x128xf32>
    %55 = arith.mulf %54, %53 : vector<8x128xf32>
    %cst_15 = arith.constant 1.000000e+00 : f32
    %56 = vector.broadcast %cst_15 : f32 to vector<8x128xf32>
    %57 = arith.subf %55, %56 : vector<8x128xf32>
    %58 = arith.select %9, %57, %53 : vector<8x128xi1>, vector<8x128xf32>
    %59 = vector.extract_strided_slice %58 {offsets = [0, 0], sizes = [8, 32], strides = [1, 1]} : vector<8x128xf32> to vector<8x32xf32>
    %60 = vector.extract_strided_slice %58 {offsets = [0, 32], sizes = [8, 32], strides = [1, 1]} : vector<8x128xf32> to vector<8x32xf32>
    %61 = vector.extract_strided_slice %58 {offsets = [0, 64], sizes = [8, 32], strides = [1, 1]} : vector<8x128xf32> to vector<8x32xf32>
    %62 = vector.extract_strided_slice %58 {offsets = [0, 96], sizes = [8, 32], strides = [1, 1]} : vector<8x128xf32> to vector<8x32xf32>
    %63 = arith.mulf %60, %37 : vector<8x32xf32>
    %64 = arith.mulf %59, %61 : vector<8x32xf32>
    %65 = arith.addf %63, %64 : vector<8x32xf32>
    %66 = math.tanh %65 : vector<8x32xf32>
    %67 = arith.mulf %62, %66 : vector<8x32xf32>
    %68 = vector.extract_strided_slice %0 {offsets = [0, 2], sizes = [8, 1], strides = [1, 1]} : vector<8x8xf32> to vector<8x1xf32>
    %69 = vector.broadcast %68 : vector<8x1xf32> to vector<8x128xf32>
    %70 = vector.broadcast %1 : vector<1x128xf32> to vector<8x128xf32>
    %71 = arith.mulf %69, %70 : vector<8x128xf32>
    %72 = vector.broadcast %2 : vector<1x128xf32> to vector<8x128xf32>
    %73 = arith.addf %71, %72 : vector<8x128xf32>
    %74 = arith.truncf %67 : vector<8x32xf32> to vector<8x32xbf16>
    %cst_16 = arith.constant dense<0.000000e+00> : vector<8x128xf32>
    %75 = tpu.matmul %74, %3, %cst_16 {dimension_numbers = #tpu.dot_dimension_numbers<[1], [0], [0], [1], [0, 0, 1, 1], [], []>} : vector<8x32xbf16>, vector<32x128xbf16>, vector<8x128xf32> -> vector<8x128xf32>
    %76 = arith.addf %73, %75 : vector<8x128xf32>
    %77 = arith.negf %76 : vector<8x128xf32>
    %78 = math.exp %77 : vector<8x128xf32>
    %cst_17 = arith.constant 1.000000e+00 : f32
    %79 = vector.broadcast %cst_17 : f32 to vector<8x128xf32>
    %80 = arith.addf %79, %78 : vector<8x128xf32>
    %81 = arith.divf %79, %80 : vector<8x128xf32>
    %cst_18 = arith.constant 2.000000e+00 : f32
    %82 = vector.broadcast %cst_18 : f32 to vector<8x128xf32>
    %83 = arith.mulf %82, %81 : vector<8x128xf32>
    %cst_19 = arith.constant 1.000000e+00 : f32
    %84 = vector.broadcast %cst_19 : f32 to vector<8x128xf32>
    %85 = arith.subf %83, %84 : vector<8x128xf32>
    %86 = arith.select %9, %85, %81 : vector<8x128xi1>, vector<8x128xf32>
    %87 = vector.extract_strided_slice %86 {offsets = [0, 0], sizes = [8, 32], strides = [1, 1]} : vector<8x128xf32> to vector<8x32xf32>
    %88 = vector.extract_strided_slice %86 {offsets = [0, 32], sizes = [8, 32], strides = [1, 1]} : vector<8x128xf32> to vector<8x32xf32>
    %89 = vector.extract_strided_slice %86 {offsets = [0, 64], sizes = [8, 32], strides = [1, 1]} : vector<8x128xf32> to vector<8x32xf32>
    %90 = vector.extract_strided_slice %86 {offsets = [0, 96], sizes = [8, 32], strides = [1, 1]} : vector<8x128xf32> to vector<8x32xf32>
    %91 = arith.mulf %88, %65 : vector<8x32xf32>
    %92 = arith.mulf %87, %89 : vector<8x32xf32>
    %93 = arith.addf %91, %92 : vector<8x32xf32>
    %94 = math.tanh %93 : vector<8x32xf32>
    %95 = arith.mulf %90, %94 : vector<8x32xf32>
    %96 = vector.extract_strided_slice %0 {offsets = [0, 3], sizes = [8, 1], strides = [1, 1]} : vector<8x8xf32> to vector<8x1xf32>
    %97 = vector.broadcast %96 : vector<8x1xf32> to vector<8x128xf32>
    %98 = vector.broadcast %1 : vector<1x128xf32> to vector<8x128xf32>
    %99 = arith.mulf %97, %98 : vector<8x128xf32>
    %100 = vector.broadcast %2 : vector<1x128xf32> to vector<8x128xf32>
    %101 = arith.addf %99, %100 : vector<8x128xf32>
    %102 = arith.truncf %95 : vector<8x32xf32> to vector<8x32xbf16>
    %cst_20 = arith.constant dense<0.000000e+00> : vector<8x128xf32>
    %103 = tpu.matmul %102, %3, %cst_20 {dimension_numbers = #tpu.dot_dimension_numbers<[1], [0], [0], [1], [0, 0, 1, 1], [], []>} : vector<8x32xbf16>, vector<32x128xbf16>, vector<8x128xf32> -> vector<8x128xf32>
    %104 = arith.addf %101, %103 : vector<8x128xf32>
    %105 = arith.negf %104 : vector<8x128xf32>
    %106 = math.exp %105 : vector<8x128xf32>
    %cst_21 = arith.constant 1.000000e+00 : f32
    %107 = vector.broadcast %cst_21 : f32 to vector<8x128xf32>
    %108 = arith.addf %107, %106 : vector<8x128xf32>
    %109 = arith.divf %107, %108 : vector<8x128xf32>
    %cst_22 = arith.constant 2.000000e+00 : f32
    %110 = vector.broadcast %cst_22 : f32 to vector<8x128xf32>
    %111 = arith.mulf %110, %109 : vector<8x128xf32>
    %cst_23 = arith.constant 1.000000e+00 : f32
    %112 = vector.broadcast %cst_23 : f32 to vector<8x128xf32>
    %113 = arith.subf %111, %112 : vector<8x128xf32>
    %114 = arith.select %9, %113, %109 : vector<8x128xi1>, vector<8x128xf32>
    %115 = vector.extract_strided_slice %114 {offsets = [0, 0], sizes = [8, 32], strides = [1, 1]} : vector<8x128xf32> to vector<8x32xf32>
    %116 = vector.extract_strided_slice %114 {offsets = [0, 32], sizes = [8, 32], strides = [1, 1]} : vector<8x128xf32> to vector<8x32xf32>
    %117 = vector.extract_strided_slice %114 {offsets = [0, 64], sizes = [8, 32], strides = [1, 1]} : vector<8x128xf32> to vector<8x32xf32>
    %118 = vector.extract_strided_slice %114 {offsets = [0, 96], sizes = [8, 32], strides = [1, 1]} : vector<8x128xf32> to vector<8x32xf32>
    %119 = arith.mulf %116, %93 : vector<8x32xf32>
    %120 = arith.mulf %115, %117 : vector<8x32xf32>
    %121 = arith.addf %119, %120 : vector<8x32xf32>
    %122 = math.tanh %121 : vector<8x32xf32>
    %123 = arith.mulf %118, %122 : vector<8x32xf32>
    %124 = vector.extract_strided_slice %0 {offsets = [0, 4], sizes = [8, 1], strides = [1, 1]} : vector<8x8xf32> to vector<8x1xf32>
    %125 = vector.broadcast %124 : vector<8x1xf32> to vector<8x128xf32>
    %126 = vector.broadcast %1 : vector<1x128xf32> to vector<8x128xf32>
    %127 = arith.mulf %125, %126 : vector<8x128xf32>
    %128 = vector.broadcast %2 : vector<1x128xf32> to vector<8x128xf32>
    %129 = arith.addf %127, %128 : vector<8x128xf32>
    %130 = arith.truncf %123 : vector<8x32xf32> to vector<8x32xbf16>
    %cst_24 = arith.constant dense<0.000000e+00> : vector<8x128xf32>
    %131 = tpu.matmul %130, %3, %cst_24 {dimension_numbers = #tpu.dot_dimension_numbers<[1], [0], [0], [1], [0, 0, 1, 1], [], []>} : vector<8x32xbf16>, vector<32x128xbf16>, vector<8x128xf32> -> vector<8x128xf32>
    %132 = arith.addf %129, %131 : vector<8x128xf32>
    %133 = arith.negf %132 : vector<8x128xf32>
    %134 = math.exp %133 : vector<8x128xf32>
    %cst_25 = arith.constant 1.000000e+00 : f32
    %135 = vector.broadcast %cst_25 : f32 to vector<8x128xf32>
    %136 = arith.addf %135, %134 : vector<8x128xf32>
    %137 = arith.divf %135, %136 : vector<8x128xf32>
    %cst_26 = arith.constant 2.000000e+00 : f32
    %138 = vector.broadcast %cst_26 : f32 to vector<8x128xf32>
    %139 = arith.mulf %138, %137 : vector<8x128xf32>
    %cst_27 = arith.constant 1.000000e+00 : f32
    %140 = vector.broadcast %cst_27 : f32 to vector<8x128xf32>
    %141 = arith.subf %139, %140 : vector<8x128xf32>
    %142 = arith.select %9, %141, %137 : vector<8x128xi1>, vector<8x128xf32>
    %143 = vector.extract_strided_slice %142 {offsets = [0, 0], sizes = [8, 32], strides = [1, 1]} : vector<8x128xf32> to vector<8x32xf32>
    %144 = vector.extract_strided_slice %142 {offsets = [0, 32], sizes = [8, 32], strides = [1, 1]} : vector<8x128xf32> to vector<8x32xf32>
    %145 = vector.extract_strided_slice %142 {offsets = [0, 64], sizes = [8, 32], strides = [1, 1]} : vector<8x128xf32> to vector<8x32xf32>
    %146 = vector.extract_strided_slice %142 {offsets = [0, 96], sizes = [8, 32], strides = [1, 1]} : vector<8x128xf32> to vector<8x32xf32>
    %147 = arith.mulf %144, %121 : vector<8x32xf32>
    %148 = arith.mulf %143, %145 : vector<8x32xf32>
    %149 = arith.addf %147, %148 : vector<8x32xf32>
    %150 = math.tanh %149 : vector<8x32xf32>
    %151 = arith.mulf %146, %150 : vector<8x32xf32>
    %152 = vector.extract_strided_slice %0 {offsets = [0, 5], sizes = [8, 1], strides = [1, 1]} : vector<8x8xf32> to vector<8x1xf32>
    %153 = vector.broadcast %152 : vector<8x1xf32> to vector<8x128xf32>
    %154 = vector.broadcast %1 : vector<1x128xf32> to vector<8x128xf32>
    %155 = arith.mulf %153, %154 : vector<8x128xf32>
    %156 = vector.broadcast %2 : vector<1x128xf32> to vector<8x128xf32>
    %157 = arith.addf %155, %156 : vector<8x128xf32>
    %158 = arith.truncf %151 : vector<8x32xf32> to vector<8x32xbf16>
    %cst_28 = arith.constant dense<0.000000e+00> : vector<8x128xf32>
    %159 = tpu.matmul %158, %3, %cst_28 {dimension_numbers = #tpu.dot_dimension_numbers<[1], [0], [0], [1], [0, 0, 1, 1], [], []>} : vector<8x32xbf16>, vector<32x128xbf16>, vector<8x128xf32> -> vector<8x128xf32>
    %160 = arith.addf %157, %159 : vector<8x128xf32>
    %161 = arith.negf %160 : vector<8x128xf32>
    %162 = math.exp %161 : vector<8x128xf32>
    %cst_29 = arith.constant 1.000000e+00 : f32
    %163 = vector.broadcast %cst_29 : f32 to vector<8x128xf32>
    %164 = arith.addf %163, %162 : vector<8x128xf32>
    %165 = arith.divf %163, %164 : vector<8x128xf32>
    %cst_30 = arith.constant 2.000000e+00 : f32
    %166 = vector.broadcast %cst_30 : f32 to vector<8x128xf32>
    %167 = arith.mulf %166, %165 : vector<8x128xf32>
    %cst_31 = arith.constant 1.000000e+00 : f32
    %168 = vector.broadcast %cst_31 : f32 to vector<8x128xf32>
    %169 = arith.subf %167, %168 : vector<8x128xf32>
    %170 = arith.select %9, %169, %165 : vector<8x128xi1>, vector<8x128xf32>
    %171 = vector.extract_strided_slice %170 {offsets = [0, 0], sizes = [8, 32], strides = [1, 1]} : vector<8x128xf32> to vector<8x32xf32>
    %172 = vector.extract_strided_slice %170 {offsets = [0, 32], sizes = [8, 32], strides = [1, 1]} : vector<8x128xf32> to vector<8x32xf32>
    %173 = vector.extract_strided_slice %170 {offsets = [0, 64], sizes = [8, 32], strides = [1, 1]} : vector<8x128xf32> to vector<8x32xf32>
    %174 = vector.extract_strided_slice %170 {offsets = [0, 96], sizes = [8, 32], strides = [1, 1]} : vector<8x128xf32> to vector<8x32xf32>
    %175 = arith.mulf %172, %149 : vector<8x32xf32>
    %176 = arith.mulf %171, %173 : vector<8x32xf32>
    %177 = arith.addf %175, %176 : vector<8x32xf32>
    %178 = math.tanh %177 : vector<8x32xf32>
    %179 = arith.mulf %174, %178 : vector<8x32xf32>
    %180 = vector.extract_strided_slice %0 {offsets = [0, 6], sizes = [8, 1], strides = [1, 1]} : vector<8x8xf32> to vector<8x1xf32>
    %181 = vector.broadcast %180 : vector<8x1xf32> to vector<8x128xf32>
    %182 = vector.broadcast %1 : vector<1x128xf32> to vector<8x128xf32>
    %183 = arith.mulf %181, %182 : vector<8x128xf32>
    %184 = vector.broadcast %2 : vector<1x128xf32> to vector<8x128xf32>
    %185 = arith.addf %183, %184 : vector<8x128xf32>
    %186 = arith.truncf %179 : vector<8x32xf32> to vector<8x32xbf16>
    %cst_32 = arith.constant dense<0.000000e+00> : vector<8x128xf32>
    %187 = tpu.matmul %186, %3, %cst_32 {dimension_numbers = #tpu.dot_dimension_numbers<[1], [0], [0], [1], [0, 0, 1, 1], [], []>} : vector<8x32xbf16>, vector<32x128xbf16>, vector<8x128xf32> -> vector<8x128xf32>
    %188 = arith.addf %185, %187 : vector<8x128xf32>
    %189 = arith.negf %188 : vector<8x128xf32>
    %190 = math.exp %189 : vector<8x128xf32>
    %cst_33 = arith.constant 1.000000e+00 : f32
    %191 = vector.broadcast %cst_33 : f32 to vector<8x128xf32>
    %192 = arith.addf %191, %190 : vector<8x128xf32>
    %193 = arith.divf %191, %192 : vector<8x128xf32>
    %cst_34 = arith.constant 2.000000e+00 : f32
    %194 = vector.broadcast %cst_34 : f32 to vector<8x128xf32>
    %195 = arith.mulf %194, %193 : vector<8x128xf32>
    %cst_35 = arith.constant 1.000000e+00 : f32
    %196 = vector.broadcast %cst_35 : f32 to vector<8x128xf32>
    %197 = arith.subf %195, %196 : vector<8x128xf32>
    %198 = arith.select %9, %197, %193 : vector<8x128xi1>, vector<8x128xf32>
    %199 = vector.extract_strided_slice %198 {offsets = [0, 0], sizes = [8, 32], strides = [1, 1]} : vector<8x128xf32> to vector<8x32xf32>
    %200 = vector.extract_strided_slice %198 {offsets = [0, 32], sizes = [8, 32], strides = [1, 1]} : vector<8x128xf32> to vector<8x32xf32>
    %201 = vector.extract_strided_slice %198 {offsets = [0, 64], sizes = [8, 32], strides = [1, 1]} : vector<8x128xf32> to vector<8x32xf32>
    %202 = vector.extract_strided_slice %198 {offsets = [0, 96], sizes = [8, 32], strides = [1, 1]} : vector<8x128xf32> to vector<8x32xf32>
    %203 = arith.mulf %200, %177 : vector<8x32xf32>
    %204 = arith.mulf %199, %201 : vector<8x32xf32>
    %205 = arith.addf %203, %204 : vector<8x32xf32>
    %206 = math.tanh %205 : vector<8x32xf32>
    %207 = arith.mulf %202, %206 : vector<8x32xf32>
    %208 = vector.extract_strided_slice %0 {offsets = [0, 7], sizes = [8, 1], strides = [1, 1]} : vector<8x8xf32> to vector<8x1xf32>
    %209 = vector.broadcast %208 : vector<8x1xf32> to vector<8x128xf32>
    %210 = vector.broadcast %1 : vector<1x128xf32> to vector<8x128xf32>
    %211 = arith.mulf %209, %210 : vector<8x128xf32>
    %212 = vector.broadcast %2 : vector<1x128xf32> to vector<8x128xf32>
    %213 = arith.addf %211, %212 : vector<8x128xf32>
    %214 = arith.truncf %207 : vector<8x32xf32> to vector<8x32xbf16>
    %cst_36 = arith.constant dense<0.000000e+00> : vector<8x128xf32>
    %215 = tpu.matmul %214, %3, %cst_36 {dimension_numbers = #tpu.dot_dimension_numbers<[1], [0], [0], [1], [0, 0, 1, 1], [], []>} : vector<8x32xbf16>, vector<32x128xbf16>, vector<8x128xf32> -> vector<8x128xf32>
    %216 = arith.addf %213, %215 : vector<8x128xf32>
    %217 = arith.negf %216 : vector<8x128xf32>
    %218 = math.exp %217 : vector<8x128xf32>
    %cst_37 = arith.constant 1.000000e+00 : f32
    %219 = vector.broadcast %cst_37 : f32 to vector<8x128xf32>
    %220 = arith.addf %219, %218 : vector<8x128xf32>
    %221 = arith.divf %219, %220 : vector<8x128xf32>
    %cst_38 = arith.constant 2.000000e+00 : f32
    %222 = vector.broadcast %cst_38 : f32 to vector<8x128xf32>
    %223 = arith.mulf %222, %221 : vector<8x128xf32>
    %cst_39 = arith.constant 1.000000e+00 : f32
    %224 = vector.broadcast %cst_39 : f32 to vector<8x128xf32>
    %225 = arith.subf %223, %224 : vector<8x128xf32>
    %226 = arith.select %9, %225, %221 : vector<8x128xi1>, vector<8x128xf32>
    %227 = vector.extract_strided_slice %226 {offsets = [0, 0], sizes = [8, 32], strides = [1, 1]} : vector<8x128xf32> to vector<8x32xf32>
    %228 = vector.extract_strided_slice %226 {offsets = [0, 32], sizes = [8, 32], strides = [1, 1]} : vector<8x128xf32> to vector<8x32xf32>
    %229 = vector.extract_strided_slice %226 {offsets = [0, 64], sizes = [8, 32], strides = [1, 1]} : vector<8x128xf32> to vector<8x32xf32>
    %230 = vector.extract_strided_slice %226 {offsets = [0, 96], sizes = [8, 32], strides = [1, 1]} : vector<8x128xf32> to vector<8x32xf32>
    %231 = arith.mulf %228, %205 : vector<8x32xf32>
    %232 = arith.mulf %227, %229 : vector<8x32xf32>
    %233 = arith.addf %231, %232 : vector<8x32xf32>
    %234 = math.tanh %233 : vector<8x32xf32>
    %235 = arith.mulf %230, %234 : vector<8x32xf32>
    %c0_40 = arith.constant 0 : index
    %c0_41 = arith.constant 0 : index
    %236 = vector.load %arg5[%c0_40, %c0_41] : memref<1x32xf32, #tpu.memory_space<vmem>>, vector<1x32xf32>
    %cst_42 = arith.constant dense<0.000000e+00> : vector<1x8xf32>
    %237 = tpu.matmul %236, %235, %cst_42 {dimension_numbers = #tpu.dot_dimension_numbers<[1], [1], [0], [0], [0, 0, 1, 0], [], []>} : vector<1x32xf32>, vector<8x32xf32>, vector<1x8xf32> -> vector<1x8xf32>
    %c0_43 = arith.constant 0 : index
    %c0_44 = arith.constant 0 : index
    %238 = vector.load %arg6[%c0_43, %c0_44] : memref<1x1xf32, #tpu.memory_space<vmem>>, vector<1x1xf32>
    %239 = vector.broadcast %238 : vector<1x1xf32> to vector<1x8xf32>
    %240 = arith.addf %237, %239 : vector<1x8xf32>
    %c0_45 = arith.constant 0 : index
    %c0_46 = arith.constant 0 : index
    %241 = vector.load %arg7[%c0_45, %c0_46] : memref<1x8xf32, #tpu.memory_space<vmem>>, vector<1x8xf32>
    tpu.vector_store %arg7[%c0_45, %c0_46], %240 {strides = array<i32>} : memref<1x8xf32, #tpu.memory_space<vmem>>, vector<1x8xf32>,
    return
  }
  func.func @transform_0(%arg0: i32) -> (i32, i32) {
    %c0_i32 = arith.constant 0 : i32
    %c0_i32_0 = arith.constant 0 : i32
    return %arg0, %c0_i32 : i32, i32
  }
  func.func @transform_1(%arg0: i32) -> (i32, i32) {
    %c0_i32 = arith.constant 0 : i32
    %c0_i32_0 = arith.constant 0 : i32
    %c0_i32_1 = arith.constant 0 : i32
    return %c0_i32, %c0_i32_0 : i32, i32
  }
  func.func @transform_2(%arg0: i32) -> (i32, i32) {
    %c0_i32 = arith.constant 0 : i32
    %c0_i32_0 = arith.constant 0 : i32
    %c0_i32_1 = arith.constant 0 : i32
    return %c0_i32, %c0_i32_0 : i32, i32
  }
  func.func @transform_3(%arg0: i32) -> (i32, i32) {
    %c0_i32 = arith.constant 0 : i32
    %c0_i32_0 = arith.constant 0 : i32
    %c0_i32_1 = arith.constant 0 : i32
    return %c0_i32, %c0_i32_0 : i32, i32
  }
  func.func @transform_4(%arg0: i32) -> (i32, i32) {
    %c0_i32 = arith.constant 0 : i32
    %c0_i32_0 = arith.constant 0 : i32
    %c0_i32_1 = arith.constant 0 : i32
    return %c0_i32, %c0_i32_0 : i32, i32
  }
  func.func @transform_5(%arg0: i32) -> (i32, i32) {
    %c0_i32 = arith.constant 0 : i32
    %c0_i32_0 = arith.constant 0 : i32
    %c0_i32_1 = arith.constant 0 : i32
    return %c0_i32, %c0_i32_0 : i32, i32
  }
  func.func @transform_6(%arg0: i32) -> (i32, i32) {
    %c0_i32 = arith.constant 0 : i32
    %c0_i32_0 = arith.constant 0 : i32
    return %c0_i32, %arg0 : i32, i32
  }
}

</mosaic_0001>

<llo_original>
// kernel: tpu_custom_call.1
$region0: #{tpu_custom_call.1}
  #allocation0 [shape = 'u32[]', space=smem, size = 0x4, offset = 0x4, fixed_abs, tag = 'smem constant byte address 0x4 - core index']
  #allocation1 [shape = 'u32[144,128]{1,0:T(1,128)}', space=vmem, size = 0x12000, scoped, tag = 'internal scratch']
  #allocation2 [shape = 'f32[1,1]{1,0:T(1,128)S(1)}', space=vmem, size = 0x200, scoped, tag = 'scoped memory for tpu_custom_call.1']
  %s0 = inlined_call_operand.hbm [shape: f32[8,8], index: 0, kind: input, shape index: {}]
  %s1 = inlined_call_operand.vmem [shape: f32[1,128], index: 1, kind: input, shape index: {}]
  %s2 = inlined_call_operand.hbm [shape: bf16[32,128], index: 2, kind: input, shape index: {}]
  %s3 = inlined_call_operand.vmem [shape: f32[1,128], index: 3, kind: input, shape index: {}]
  %s4 = inlined_call_operand.vmem [shape: f32[1,32], index: 4, kind: input, shape index: {}]
  %s5 = inlined_call_operand.<no memory space> [shape: f32[1,1], index: 5, kind: input, shape index: {}]
  %s6 = inlined_call_operand.hbm [shape: f32[1,8], index: 6, kind: output, shape index: {}]
  %s7 = sld [smem:[#allocation0]]
  $region42: #{tpu_custom_call.1} parent=0
    _
  %s9 = ssub.s32 1, %s7
  %s10 = scalar_select 0, %s9, %s7
  %v11 = vstv %s5
  %12 = vst [vmem:[#allocation2] sm:$0x1] %v11
  $region1: #{tpu_custom_call.1} parent=0
    #allocation3 [shape = 'u8[4096]{0}', space=vmem, size = 0x1000, scoped, tag = 'input window, operand 0, single buffered']
    #allocation4 [shape = 's32[1]{0}', space=sflag, size = 0x4, scoped, tag = 'scoped memory for tpu_custom_call.1']
    #allocation5 [shape = 's32[1]{0}', space=sflag, size = 0x4, scoped, tag = 'scoped memory for tpu_custom_call.1']
    #allocation6 [shape = 'u8[8192]{0}', space=vmem, size = 0x2000, scoped, tag = 'input window, operand 2, single buffered']
    #allocation7 [shape = 's32[1]{0}', space=sflag, size = 0x4, scoped, tag = 'scoped memory for tpu_custom_call.1']
    #allocation8 [shape = 'u8[512]{0}', space=vmem, size = 0x400, scoped, tag = 'output window, operand 0, single buffered']
    %13 = vsyncpa [#allocation4], 0
    %14 = vsyncpa [#allocation7], 0
    %15 = vsyncpa [#allocation5], 0
    // Predicated region
    $region2: #{tpu_custom_call.1} parent=1 // pred_check
      _
    $region3: #{tpu_custom_call.1} parent=1 // pred_check_branch
      %17 = sbr.rel (0) target = $region5
    $region4: #{tpu_custom_call.1} parent=1 // pred_region
      %s19 = ssub.s32 128, 128
      %20 = vsyncadd [#allocation4], %s19
      %s22 = sshll.u32 [#allocation3], 4
      %s23 = int_to_ptr.vmem [resolvable:$true] %s22
      %25 = dma.hbm_to_vmem [thread:$0]  %s0, 128, %s23, [#allocation4]
    $region5: #{tpu_custom_call.1} parent=1 // pred_fallthru
      _
    // Predicated region
    $region6: #{tpu_custom_call.1} parent=1 // pred_check
      _
    $region7: #{tpu_custom_call.1} parent=1 // pred_check_branch
      %27 = sbr.rel (0) target = $region9
    $region8: #{tpu_custom_call.1} parent=1 // pred_region
      _
    $region9: #{tpu_custom_call.1} parent=1 // pred_fallthru
      _
    // Predicated region
    $region10: #{tpu_custom_call.1} parent=1 // pred_check
      _
    $region11: #{tpu_custom_call.1} parent=1 // pred_check_branch
      %29 = sbr.rel (0) target = $region13
    $region12: #{tpu_custom_call.1} parent=1 // pred_region
      %s31 = ssub.s32 256, 256
      %32 = vsyncadd [#allocation7], %s31
      %s33 = sshll.u32 [#allocation6], 4
      %s34 = int_to_ptr.vmem [resolvable:$true] %s33
      %39 = dma.hbm_to_vmem [thread:$0]  %s2, 256, %s34, [#allocation7], 64, 64, 4
    $region13: #{tpu_custom_call.1} parent=1 // pred_fallthru
      _
    // Predicated region
    $region14: #{tpu_custom_call.1} parent=1 // pred_check
      _
    $region15: #{tpu_custom_call.1} parent=1 // pred_check_branch
      %41 = sbr.rel (0) target = $region17
    $region16: #{tpu_custom_call.1} parent=1 // pred_region
      _
    $region17: #{tpu_custom_call.1} parent=1 // pred_fallthru
      _
    // Predicated region
    $region18: #{tpu_custom_call.1} parent=1 // pred_check
      _
    $region19: #{tpu_custom_call.1} parent=1 // pred_check_branch
      %43 = sbr.rel (0) target = $region21
    $region20: #{tpu_custom_call.1} parent=1 // pred_region
      _
    $region21: #{tpu_custom_call.1} parent=1 // pred_fallthru
      _
    // Predicated region
    $region22: #{tpu_custom_call.1} parent=1 // pred_check
      _
    $region23: #{tpu_custom_call.1} parent=1 // pred_check_branch
      %45 = sbr.rel (0) target = $region25
    $region24: #{tpu_custom_call.1} parent=1 // pred_region
      _
    $region25: #{tpu_custom_call.1} parent=1 // pred_fallthru
      _
    // Predicated region
    $region26: #{tpu_custom_call.1} parent=1 // pred_check
      _
    $region27: #{tpu_custom_call.1} parent=1 // pred_check_branch
      %47 = sbr.rel (0) target = $region29
    $region28: #{tpu_custom_call.1} parent=1 // pred_region
      %48 = dma.done [#allocation4], 128
    $region29: #{tpu_custom_call.1} parent=1 // pred_fallthru
      _
    // Predicated region
    $region30: #{tpu_custom_call.1} parent=1 // pred_check
      _
    $region31: #{tpu_custom_call.1} parent=1 // pred_check_branch
      %50 = sbr.rel (0) target = $region33
    $region32: #{tpu_custom_call.1} parent=1 // pred_region
      %51 = dma.done [#allocation7], 256
    $region33: #{tpu_custom_call.1} parent=1 // pred_fallthru
      _
    %v53 = vld [vmem:[#allocation3] sm:$0xff]
    %v54 = vld [vmem:[%s1] sm:$0x1]
    %v55 = vld [vmem:[%s3] sm:$0x1]
    %v56 = vld [vmem:[#allocation6] sm:$0xf]
    %v57 = vld [vmem:[#allocation6 + $0x4] sm:$0xf]
    %v58 = vld [vmem:[#allocation6 + $0x8] sm:$0xf]
    %v59 = vld [vmem:[#allocation6 + $0xc] sm:$0xf]
    %v60 = vlaneseq
    %v61 = vand.u32 %v60, 127
    %vm62 = vcmp.ge.s32.totalorder %v61, 64
    %vm63 = vcmp.lt.s32.totalorder %v61, 96
    %vm64 = vmand %vm62, %vm63
    %66 = vset.pattern.permute.xlu0 0
    %67 = vperm.xlu0 %66, %v53
    %v68 = vpop.permute.xlu0 %67
    %v71 = vlaneseq
    %v72 = vshrl.u32 %v71, 7
    %v73 = vsub.s32 0, %v72
    %v74 = vrot.slane %v54, %v73
    %v76 = vmul.f32 %v68, %v74
    %v78 = vlaneseq
    %v79 = vshrl.u32 %v78, 7
    %v80 = vsub.s32 0, %v79
    %v81 = vrot.slane %v55, %v80
    %v83 = vadd.f32 %v76, %v81
    %v88 = vunpack.c.l.b16 %v56
    %v89 = vunpack.c.l.b16 %v57
    %v90 = vunpack.c.l.b16 %v58
    %v91 = vunpack.c.l.b16 %v59
    %v92 = vpack.c.b16 %v89, %v88
    %v93 = vpack.c.b16 %v91, %v90
    %vm96 = vcmask 261120
    %v98 = vsel %vm96, 0, 0
    %100 = vmatprep.subr.bf16.mxu0 0
    %101 = vmatpush1.bf16.msra.mxu0 %v92
    %102 = vmatprep.subr.bf16.mxu0 0
    %103 = vmatpush1.bf16.msra.mxu0 %v93
    %104 = vmatprep.subr.bf16.mxu0 0
    %105 = vmatpush1.bf16.msra.mxu0 0
    %106 = vmatprep.subr.bf16.mxu0 0
    %107 = vmatpush1.bf16.msra.mxu0 0
    %108 = vmatprep.subr.bf16.mxu0 0
    %109 = vmatpush1.bf16.msra.mxu0 0
    %110 = vmatprep.subr.bf16.mxu0 0
    %111 = vmatpush1.bf16.msra.mxu0 0
    %112 = vmatprep.subr.bf16.mxu0 0
    %113 = vmatpush1.bf16.msra.mxu0 0
    %114 = vmatprep.subr.bf16.mxu0 0
    %115 = vmatpush1.bf16.msra.mxu0 0
    %116 = vmatprep.subr.bf16.mxu0 0
    %117 = vmatpush1.bf16.msra.mxu0 0
    %118 = vmatprep.subr.bf16.mxu0 0
    %119 = vmatpush1.bf16.msra.mxu0 0
    %120 = vmatprep.subr.bf16.mxu0 0
    %121 = vmatpush1.bf16.msra.mxu0 0
    %122 = vmatprep.subr.bf16.mxu0 0
    %123 = vmatpush1.bf16.msra.mxu0 0
    %124 = vmatprep.subr.bf16.mxu0 0
    %125 = vmatpush1.bf16.msra.mxu0 0
    %126 = vmatprep.subr.bf16.mxu0 0
    %127 = vmatpush1.bf16.msra.mxu0 0
    %128 = vmatprep.subr.bf16.mxu0 0
    %129 = vmatpush1.bf16.msra.mxu0 0
    %130 = vmatprep.subr.bf16.mxu0 0
    %131 = vmatpush1.bf16.msra.mxu0 0
    %132 = vmatprep.mubr.bf16.mxu0 0
    %133 = vmatmul.mubr.bf16.gmra.mrb[0].mxu0 %v98
    %v134 = vpop.f32.mrb[0].mxu0
    %v135 = vadd.f32 0.0, %v134
    %v136 = vpop.f32.mrb[0].mxu0
    %v137 = vpop.f32.mrb[0].mxu0
    %v138 = vpop.f32.mrb[0].mxu0
    %139 = vdwg.mxu0
    %v140 = vadd.f32 %v83, %v135
    %v141 = vxor.u32 %v140, 2147483648
    %v142 = vmul.f32 %v141, 1.442695
    %v143 = vpow.pop %v142
    %v144 = vadd.f32 %v143, 1.0
    %v145 = vrcp.pop %v144
    %v146 = vmul.f32 1.0, %v145
    %v147 = vmul.f32 %v146, 2.0
    %v148 = vsub.f32 %v147, 1.0
    %v149 = vsel %vm64, %v148, %v146
    %v150 = vmul.f32 %v149, 0.0
    %152 = vrot.lane.b32.xlu0 %v149, 64
    %v153 = vpop.permute.xlu0 %152
    %v155 = vmul.f32 %v149, %v153
    %157 = vrot.lane.b32.xlu0 %v155, 32
    %v158 = vpop.permute.xlu0 %157
    %v160 = vadd.f32 %v150, %v158
    %v161 = vtanh.pop %v160
    %163 = vrot.lane.b32.xlu0 %v161, 64
    %v164 = vpop.permute.xlu0 %163
    %v166 = vmul.f32 %v149, %v164
    %167 = vset.pattern.permute.xlu0 1
    %168 = vperm.xlu0 %167, %v53
    %v169 = vpop.permute.xlu0 %168
    %v171 = vmul.f32 %v169, %v74
    %v172 = vadd.f32 %v171, %v81
    %v173 = vpack.c.bf16 %v166, %v166
    %175 = vrot.lane.b32.xlu0 %v173, 32
    %v176 = vpop.permute.xlu0 %175
    %v178 = vsel %vm96, %v176, 0
    %180 = vmatprep.subr.bf16.mxu0 0
    %181 = vmatpush1.bf16.msra.mxu0 %v92
    %182 = vmatprep.subr.bf16.mxu0 0
    %183 = vmatpush1.bf16.msra.mxu0 %v93
    %184 = vmatprep.subr.bf16.mxu0 0
    %185 = vmatpush1.bf16.msra.mxu0 0
    %186 = vmatprep.subr.bf16.mxu0 0
    %187 = vmatpush1.bf16.msra.mxu0 0
    %188 = vmatprep.subr.bf16.mxu0 0
    %189 = vmatpush1.bf16.msra.mxu0 0
    %190 = vmatprep.subr.bf16.mxu0 0
    %191 = vmatpush1.bf16.msra.mxu0 0
    %192 = vmatprep.subr.bf16.mxu0 0
    %193 = vmatpush1.bf16.msra.mxu0 0
    %194 = vmatprep.subr.bf16.mxu0 0
    %195 = vmatpush1.bf16.msra.mxu0 0
    %196 = vmatprep.subr.bf16.mxu0 0
    %197 = vmatpush1.bf16.msra.mxu0 0
    %198 = vmatprep.subr.bf16.mxu0 0
    %199 = vmatpush1.bf16.msra.mxu0 0
    %200 = vmatprep.subr.bf16.mxu0 0
    %201 = vmatpush1.bf16.msra.mxu0 0
    %202 = vmatprep.subr.bf16.mxu0 0
    %203 = vmatpush1.bf16.msra.mxu0 0
    %204 = vmatprep.subr.bf16.mxu0 0
    %205 = vmatpush1.bf16.msra.mxu0 0
    %206 = vmatprep.subr.bf16.mxu0 0
    %207 = vmatpush1.bf16.msra.mxu0 0
    %208 = vmatprep.subr.bf16.mxu0 0
    %209 = vmatpush1.bf16.msra.mxu0 0
    %210 = vmatprep.subr.bf16.mxu0 0
    %211 = vmatpush1.bf16.msra.mxu0 0
    %212 = vmatprep.mubr.bf16.mxu0 0
    %213 = vmatmul.mubr.bf16.gmra.mrb[0].mxu0 %v178
    %v214 = vpop.f32.mrb[0].mxu0
    %v215 = vadd.f32 0.0, %v214
    %v216 = vpop.f32.mrb[0].mxu0
    %v217 = vpop.f32.mrb[0].mxu0
    %v218 = vpop.f32.mrb[0].mxu0
    %219 = vdwg.mxu0
    %v220 = vadd.f32 %v172, %v215
    %v221 = vxor.u32 %v220, 2147483648
    %v222 = vmul.f32 %v221, 1.442695
    %v223 = vpow.pop %v222
    %v224 = vadd.f32 %v223, 1.0
    %v225 = vrcp.pop %v224
    %v226 = vmul.f32 1.0, %v225
    %v227 = vmul.f32 %v226, 2.0
    %v228 = vsub.f32 %v227, 1.0
    %v229 = vsel %vm64, %v228, %v226
    %v230 = vmul.f32 %v229, %v160
    %232 = vrot.lane.b32.xlu0 %v229, 64
    %v233 = vpop.permute.xlu0 %232
    %v235 = vmul.f32 %v229, %v233
    %237 = vrot.lane.b32.xlu0 %v235, 32
    %v238 = vpop.permute.xlu0 %237
    %v240 = vadd.f32 %v230, %v238
    %v241 = vtanh.pop %v240
    %243 = vrot.lane.b32.xlu0 %v241, 64
    %v244 = vpop.permute.xlu0 %243
    %v246 = vmul.f32 %v229, %v244
    %247 = vset.pattern.permute.xlu0 2
    %248 = vperm.xlu0 %247, %v53
    %v249 = vpop.permute.xlu0 %248
    %v251 = vmul.f32 %v249, %v74
    %v252 = vadd.f32 %v251, %v81
    %v253 = vpack.c.bf16 %v246, %v246
    %255 = vrot.lane.b32.xlu0 %v253, 32
    %v256 = vpop.permute.xlu0 %255
    %v258 = vsel %vm96, %v256, 0
    %260 = vmatprep.subr.bf16.mxu0 0
    %261 = vmatpush1.bf16.msra.mxu0 %v92
    %262 = vmatprep.subr.bf16.mxu0 0
    %263 = vmatpush1.bf16.msra.mxu0 %v93
    %264 = vmatprep.subr.bf16.mxu0 0
    %265 = vmatpush1.bf16.msra.mxu0 0
    %266 = vmatprep.subr.bf16.mxu0 0
    %267 = vmatpush1.bf16.msra.mxu0 0
    %268 = vmatprep.subr.bf16.mxu0 0
    %269 = vmatpush1.bf16.msra.mxu0 0
    %270 = vmatprep.subr.bf16.mxu0 0
    %271 = vmatpush1.bf16.msra.mxu0 0
    %272 = vmatprep.subr.bf16.mxu0 0
    %273 = vmatpush1.bf16.msra.mxu0 0
    %274 = vmatprep.subr.bf16.mxu0 0
    %275 = vmatpush1.bf16.msra.mxu0 0
    %276 = vmatprep.subr.bf16.mxu0 0
    %277 = vmatpush1.bf16.msra.mxu0 0
    %278 = vmatprep.subr.bf16.mxu0 0
    %279 = vmatpush1.bf16.msra.mxu0 0
    %280 = vmatprep.subr.bf16.mxu0 0
    %281 = vmatpush1.bf16.msra.mxu0 0
    %282 = vmatprep.subr.bf16.mxu0 0
    %283 = vmatpush1.bf16.msra.mxu0 0
    %284 = vmatprep.subr.bf16.mxu0 0
    %285 = vmatpush1.bf16.msra.mxu0 0
    %286 = vmatprep.subr.bf16.mxu0 0
    %287 = vmatpush1.bf16.msra.mxu0 0
    %288 = vmatprep.subr.bf16.mxu0 0
    %289 = vmatpush1.bf16.msra.mxu0 0
    %290 = vmatprep.subr.bf16.mxu0 0
    %291 = vmatpush1.bf16.msra.mxu0 0
    %292 = vmatprep.mubr.bf16.mxu0 0
    %293 = vmatmul.mubr.bf16.gmra.mrb[0].mxu0 %v258
    %v294 = vpop.f32.mrb[0].mxu0
    %v295 = vadd.f32 0.0, %v294
    %v296 = vpop.f32.mrb[0].mxu0
    %v297 = vpop.f32.mrb[0].mxu0
    %v298 = vpop.f32.mrb[0].mxu0
    %299 = vdwg.mxu0
    %v300 = vadd.f32 %v252, %v295
    %v301 = vxor.u32 %v300, 2147483648
    %v302 = vmul.f32 %v301, 1.442695
    %v303 = vpow.pop %v302
    %v304 = vadd.f32 %v303, 1.0
    %v305 = vrcp.pop %v304
    %v306 = vmul.f32 1.0, %v305
    %v307 = vmul.f32 %v306, 2.0
    %v308 = vsub.f32 %v307, 1.0
    %v309 = vsel %vm64, %v308, %v306
    %v310 = vmul.f32 %v309, %v240
    %312 = vrot.lane.b32.xlu0 %v309, 64
    %v313 = vpop.permute.xlu0 %312
    %v315 = vmul.f32 %v309, %v313
    %317 = vrot.lane.b32.xlu0 %v315, 32
    %v318 = vpop.permute.xlu0 %317
    %v320 = vadd.f32 %v310, %v318
    %v321 = vtanh.pop %v320
    %323 = vrot.lane.b32.xlu0 %v321, 64
    %v324 = vpop.permute.xlu0 %323
    %v326 = vmul.f32 %v309, %v324
    %327 = vset.pattern.permute.xlu0 3
    %328 = vperm.xlu0 %327, %v53
    %v329 = vpop.permute.xlu0 %328
    %v331 = vmul.f32 %v329, %v74
    %v332 = vadd.f32 %v331, %v81
    %v333 = vpack.c.bf16 %v326, %v326
    %335 = vrot.lane.b32.xlu0 %v333, 32
    %v336 = vpop.permute.xlu0 %335
    %v338 = vsel %vm96, %v336, 0
    %340 = vmatprep.subr.bf16.mxu0 0
    %341 = vmatpush1.bf16.msra.mxu0 %v92
    %342 = vmatprep.subr.bf16.mxu0 0
    %343 = vmatpush1.bf16.msra.mxu0 %v93
    %344 = vmatprep.subr.bf16.mxu0 0
    %345 = vmatpush1.bf16.msra.mxu0 0
    %346 = vmatprep.subr.bf16.mxu0 0
    %347 = vmatpush1.bf16.msra.mxu0 0
    %348 = vmatprep.subr.bf16.mxu0 0
    %349 = vmatpush1.bf16.msra.mxu0 0
    %350 = vmatprep.subr.bf16.mxu0 0
    %351 = vmatpush1.bf16.msra.mxu0 0
    %352 = vmatprep.subr.bf16.mxu0 0
    %353 = vmatpush1.bf16.msra.mxu0 0
    %354 = vmatprep.subr.bf16.mxu0 0
    %355 = vmatpush1.bf16.msra.mxu0 0
    %356 = vmatprep.subr.bf16.mxu0 0
    %357 = vmatpush1.bf16.msra.mxu0 0
    %358 = vmatprep.subr.bf16.mxu0 0
    %359 = vmatpush1.bf16.msra.mxu0 0
    %360 = vmatprep.subr.bf16.mxu0 0
    %361 = vmatpush1.bf16.msra.mxu0 0
    %362 = vmatprep.subr.bf16.mxu0 0
    %363 = vmatpush1.bf16.msra.mxu0 0
    %364 = vmatprep.subr.bf16.mxu0 0
    %365 = vmatpush1.bf16.msra.mxu0 0
    %366 = vmatprep.subr.bf16.mxu0 0
    %367 = vmatpush1.bf16.msra.mxu0 0
    %368 = vmatprep.subr.bf16.mxu0 0
    %369 = vmatpush1.bf16.msra.mxu0 0
    %370 = vmatprep.subr.bf16.mxu0 0
    %371 = vmatpush1.bf16.msra.mxu0 0
    %372 = vmatprep.mubr.bf16.mxu0 0
    %373 = vmatmul.mubr.bf16.gmra.mrb[0].mxu0 %v338
    %v374 = vpop.f32.mrb[0].mxu0
    %v375 = vadd.f32 0.0, %v374
    %v376 = vpop.f32.mrb[0].mxu0
    %v377 = vpop.f32.mrb[0].mxu0
    %v378 = vpop.f32.mrb[0].mxu0
    %379 = vdwg.mxu0
    %v380 = vadd.f32 %v332, %v375
    %v381 = vxor.u32 %v380, 2147483648
    %v382 = vmul.f32 %v381, 1.442695
    %v383 = vpow.pop %v382
    %v384 = vadd.f32 %v383, 1.0
    %v385 = vrcp.pop %v384
    %v386 = vmul.f32 1.0, %v385
    %v387 = vmul.f32 %v386, 2.0
    %v388 = vsub.f32 %v387, 1.0
    %v389 = vsel %vm64, %v388, %v386
    %v390 = vmul.f32 %v389, %v320
    %392 = vrot.lane.b32.xlu0 %v389, 64
    %v393 = vpop.permute.xlu0 %392
    %v395 = vmul.f32 %v389, %v393
    %397 = vrot.lane.b32.xlu0 %v395, 32
    %v398 = vpop.permute.xlu0 %397
    %v400 = vadd.f32 %v390, %v398
    %v401 = vtanh.pop %v400
    %403 = vrot.lane.b32.xlu0 %v401, 64
    %v404 = vpop.permute.xlu0 %403
    %v406 = vmul.f32 %v389, %v404
    %407 = vset.pattern.permute.xlu0 4
    %408 = vperm.xlu0 %407, %v53
    %v409 = vpop.permute.xlu0 %408
    %v411 = vmul.f32 %v409, %v74
    %v412 = vadd.f32 %v411, %v81
    %v413 = vpack.c.bf16 %v406, %v406
    %415 = vrot.lane.b32.xlu0 %v413, 32
    %v416 = vpop.permute.xlu0 %415
    %v418 = vsel %vm96, %v416, 0
    %420 = vmatprep.subr.bf16.mxu0 0
    %421 = vmatpush1.bf16.msra.mxu0 %v92
    %422 = vmatprep.subr.bf16.mxu0 0
    %423 = vmatpush1.bf16.msra.mxu0 %v93
    %424 = vmatprep.subr.bf16.mxu0 0
    %425 = vmatpush1.bf16.msra.mxu0 0
    %426 = vmatprep.subr.bf16.mxu0 0
    %427 = vmatpush1.bf16.msra.mxu0 0
    %428 = vmatprep.subr.bf16.mxu0 0
    %429 = vmatpush1.bf16.msra.mxu0 0
    %430 = vmatprep.subr.bf16.mxu0 0
    %431 = vmatpush1.bf16.msra.mxu0 0
    %432 = vmatprep.subr.bf16.mxu0 0
    %433 = vmatpush1.bf16.msra.mxu0 0
    %434 = vmatprep.subr.bf16.mxu0 0
    %435 = vmatpush1.bf16.msra.mxu0 0
    %436 = vmatprep.subr.bf16.mxu0 0
    %437 = vmatpush1.bf16.msra.mxu0 0
    %438 = vmatprep.subr.bf16.mxu0 0
    %439 = vmatpush1.bf16.msra.mxu0 0
    %440 = vmatprep.subr.bf16.mxu0 0
    %441 = vmatpush1.bf16.msra.mxu0 0
    %442 = vmatprep.subr.bf16.mxu0 0
    %443 = vmatpush1.bf16.msra.mxu0 0
    %444 = vmatprep.subr.bf16.mxu0 0
    %445 = vmatpush1.bf16.msra.mxu0 0
    %446 = vmatprep.subr.bf16.mxu0 0
    %447 = vmatpush1.bf16.msra.mxu0 0
    %448 = vmatprep.subr.bf16.mxu0 0
    %449 = vmatpush1.bf16.msra.mxu0 0
    %450 = vmatprep.subr.bf16.mxu0 0
    %451 = vmatpush1.bf16.msra.mxu0 0
    %452 = vmatprep.mubr.bf16.mxu0 0
    %453 = vmatmul.mubr.bf16.gmra.mrb[0].mxu0 %v418
    %v454 = vpop.f32.mrb[0].mxu0
    %v455 = vadd.f32 0.0, %v454
    %v456 = vpop.f32.mrb[0].mxu0
    %v457 = vpop.f32.mrb[0].mxu0
    %v458 = vpop.f32.mrb[0].mxu0
    %459 = vdwg.mxu0
    %v460 = vadd.f32 %v412, %v455
    %v461 = vxor.u32 %v460, 2147483648
    %v462 = vmul.f32 %v461, 1.442695
    %v463 = vpow.pop %v462
    %v464 = vadd.f32 %v463, 1.0
    %v465 = vrcp.pop %v464
    %v466 = vmul.f32 1.0, %v465
    %v467 = vmul.f32 %v466, 2.0
    %v468 = vsub.f32 %v467, 1.0
    %v469 = vsel %vm64, %v468, %v466
    %v470 = vmul.f32 %v469, %v400
    %472 = vrot.lane.b32.xlu0 %v469, 64
    %v473 = vpop.permute.xlu0 %472
    %v475 = vmul.f32 %v469, %v473
    %477 = vrot.lane.b32.xlu0 %v475, 32
    %v478 = vpop.permute.xlu0 %477
    %v480 = vadd.f32 %v470, %v478
    %v481 = vtanh.pop %v480
    %483 = vrot.lane.b32.xlu0 %v481, 64
    %v484 = vpop.permute.xlu0 %483
    %v486 = vmul.f32 %v469, %v484
    %487 = vset.pattern.permute.xlu0 5
    %488 = vperm.xlu0 %487, %v53
    %v489 = vpop.permute.xlu0 %488
    %v491 = vmul.f32 %v489, %v74
    %v492 = vadd.f32 %v491, %v81
    %v493 = vpack.c.bf16 %v486, %v486
    %495 = vrot.lane.b32.xlu0 %v493, 32
    %v496 = vpop.permute.xlu0 %495
    %v498 = vsel %vm96, %v496, 0
    %500 = vmatprep.subr.bf16.mxu0 0
    %501 = vmatpush1.bf16.msra.mxu0 %v92
    %502 = vmatprep.subr.bf16.mxu0 0
    %503 = vmatpush1.bf16.msra.mxu0 %v93
    %504 = vmatprep.subr.bf16.mxu0 0
    %505 = vmatpush1.bf16.msra.mxu0 0
    %506 = vmatprep.subr.bf16.mxu0 0
    %507 = vmatpush1.bf16.msra.mxu0 0
    %508 = vmatprep.subr.bf16.mxu0 0
    %509 = vmatpush1.bf16.msra.mxu0 0
    %510 = vmatprep.subr.bf16.mxu0 0
    %511 = vmatpush1.bf16.msra.mxu0 0
    %512 = vmatprep.subr.bf16.mxu0 0
    %513 = vmatpush1.bf16.msra.mxu0 0
    %514 = vmatprep.subr.bf16.mxu0 0
    %515 = vmatpush1.bf16.msra.mxu0 0
    %516 = vmatprep.subr.bf16.mxu0 0
    %517 = vmatpush1.bf16.msra.mxu0 0
    %518 = vmatprep.subr.bf16.mxu0 0
    %519 = vmatpush1.bf16.msra.mxu0 0
    %520 = vmatprep.subr.bf16.mxu0 0
    %521 = vmatpush1.bf16.msra.mxu0 0
    %522 = vmatprep.subr.bf16.mxu0 0
    %523 = vmatpush1.bf16.msra.mxu0 0
    %524 = vmatprep.subr.bf16.mxu0 0
    %525 = vmatpush1.bf16.msra.mxu0 0
    %526 = vmatprep.subr.bf16.mxu0 0
    %527 = vmatpush1.bf16.msra.mxu0 0
    %528 = vmatprep.subr.bf16.mxu0 0
    %529 = vmatpush1.bf16.msra.mxu0 0
    %530 = vmatprep.subr.bf16.mxu0 0
    %531 = vmatpush1.bf16.msra.mxu0 0
    %532 = vmatprep.mubr.bf16.mxu0 0
    %533 = vmatmul.mubr.bf16.gmra.mrb[0].mxu0 %v498
    %v534 = vpop.f32.mrb[0].mxu0
    %v535 = vadd.f32 0.0, %v534
    %v536 = vpop.f32.mrb[0].mxu0
    %v537 = vpop.f32.mrb[0].mxu0
    %v538 = vpop.f32.mrb[0].mxu0
    %539 = vdwg.mxu0
    %v540 = vadd.f32 %v492, %v535
    %v541 = vxor.u32 %v540, 2147483648
    %v542 = vmul.f32 %v541, 1.442695
    %v543 = vpow.pop %v542
    %v544 = vadd.f32 %v543, 1.0
    %v545 = vrcp.pop %v544
    %v546 = vmul.f32 1.0, %v545
    %v547 = vmul.f32 %v546, 2.0
    %v548 = vsub.f32 %v547, 1.0
    %v549 = vsel %vm64, %v548, %v546
    %v550 = vmul.f32 %v549, %v480
    %552 = vrot.lane.b32.xlu0 %v549, 64
    %v553 = vpop.permute.xlu0 %552
    %v555 = vmul.f32 %v549, %v553
    %557 = vrot.lane.b32.xlu0 %v555, 32
    %v558 = vpop.permute.xlu0 %557
    %v560 = vadd.f32 %v550, %v558
    %v561 = vtanh.pop %v560
    %563 = vrot.lane.b32.xlu0 %v561, 64
    %v564 = vpop.permute.xlu0 %563
    %v566 = vmul.f32 %v549, %v564
    %567 = vset.pattern.permute.xlu0 6
    %568 = vperm.xlu0 %567, %v53
    %v569 = vpop.permute.xlu0 %568
    %v571 = vmul.f32 %v569, %v74
    %v572 = vadd.f32 %v571, %v81
    %v573 = vpack.c.bf16 %v566, %v566
    %575 = vrot.lane.b32.xlu0 %v573, 32
    %v576 = vpop.permute.xlu0 %575
    %v578 = vsel %vm96, %v576, 0
    %580 = vmatprep.subr.bf16.mxu0 0
    %581 = vmatpush1.bf16.msra.mxu0 %v92
    %582 = vmatprep.subr.bf16.mxu0 0
    %583 = vmatpush1.bf16.msra.mxu0 %v93
    %584 = vmatprep.subr.bf16.mxu0 0
    %585 = vmatpush1.bf16.msra.mxu0 0
    %586 = vmatprep.subr.bf16.mxu0 0
    %587 = vmatpush1.bf16.msra.mxu0 0
    %588 = vmatprep.subr.bf16.mxu0 0
    %589 = vmatpush1.bf16.msra.mxu0 0
    %590 = vmatprep.subr.bf16.mxu0 0
    %591 = vmatpush1.bf16.msra.mxu0 0
    %592 = vmatprep.subr.bf16.mxu0 0
    %593 = vmatpush1.bf16.msra.mxu0 0
    %594 = vmatprep.subr.bf16.mxu0 0
    %595 = vmatpush1.bf16.msra.mxu0 0
    %596 = vmatprep.subr.bf16.mxu0 0
    %597 = vmatpush1.bf16.msra.mxu0 0
    %598 = vmatprep.subr.bf16.mxu0 0
    %599 = vmatpush1.bf16.msra.mxu0 0
    %600 = vmatprep.subr.bf16.mxu0 0
    %601 = vmatpush1.bf16.msra.mxu0 0
    %602 = vmatprep.subr.bf16.mxu0 0
    %603 = vmatpush1.bf16.msra.mxu0 0
    %604 = vmatprep.subr.bf16.mxu0 0
    %605 = vmatpush1.bf16.msra.mxu0 0
    %606 = vmatprep.subr.bf16.mxu0 0
    %607 = vmatpush1.bf16.msra.mxu0 0
    %608 = vmatprep.subr.bf16.mxu0 0
    %609 = vmatpush1.bf16.msra.mxu0 0
    %610 = vmatprep.subr.bf16.mxu0 0
    %611 = vmatpush1.bf16.msra.mxu0 0
    %612 = vmatprep.mubr.bf16.mxu0 0
    %613 = vmatmul.mubr.bf16.gmra.mrb[0].mxu0 %v578
    %v614 = vpop.f32.mrb[0].mxu0
    %v615 = vadd.f32 0.0, %v614
    %v616 = vpop.f32.mrb[0].mxu0
    %v617 = vpop.f32.mrb[0].mxu0
    %v618 = vpop.f32.mrb[0].mxu0
    %619 = vdwg.mxu0
    %v620 = vadd.f32 %v572, %v615
    %v621 = vxor.u32 %v620, 2147483648
    %v622 = vmul.f32 %v621, 1.442695
    %v623 = vpow.pop %v622
    %v624 = vadd.f32 %v623, 1.0
    %v625 = vrcp.pop %v624
    %v626 = vmul.f32 1.0, %v625
    %v627 = vmul.f32 %v626, 2.0
    %v628 = vsub.f32 %v627, 1.0
    %v629 = vsel %vm64, %v628, %v626
    %v630 = vmul.f32 %v629, %v560
    %632 = vrot.lane.b32.xlu0 %v629, 64
    %v633 = vpop.permute.xlu0 %632
    %v635 = vmul.f32 %v629, %v633
    %637 = vrot.lane.b32.xlu0 %v635, 32
    %v638 = vpop.permute.xlu0 %637
    %v640 = vadd.f32 %v630, %v638
    %v641 = vtanh.pop %v640
    %643 = vrot.lane.b32.xlu0 %v641, 64
    %v644 = vpop.permute.xlu0 %643
    %v646 = vmul.f32 %v629, %v644
    %647 = vset.pattern.permute.xlu0 7
    %648 = vperm.xlu0 %647, %v53
    %v649 = vpop.permute.xlu0 %648
    %v651 = vmul.f32 %v649, %v74
    %v652 = vadd.f32 %v651, %v81
    %v653 = vpack.c.bf16 %v646, %v646
    %655 = vrot.lane.b32.xlu0 %v653, 32
    %v656 = vpop.permute.xlu0 %655
    %v658 = vsel %vm96, %v656, 0
    %660 = vmatprep.subr.bf16.mxu0 0
    %661 = vmatpush1.bf16.msra.mxu0 %v92
    %662 = vmatprep.subr.bf16.mxu0 0
    %663 = vmatpush1.bf16.msra.mxu0 %v93
    %664 = vmatprep.subr.bf16.mxu0 0
    %665 = vmatpush1.bf16.msra.mxu0 0
    %666 = vmatprep.subr.bf16.mxu0 0
    %667 = vmatpush1.bf16.msra.mxu0 0
    %668 = vmatprep.subr.bf16.mxu0 0
    %669 = vmatpush1.bf16.msra.mxu0 0
    %670 = vmatprep.subr.bf16.mxu0 0
    %671 = vmatpush1.bf16.msra.mxu0 0
    %672 = vmatprep.subr.bf16.mxu0 0
    %673 = vmatpush1.bf16.msra.mxu0 0
    %674 = vmatprep.subr.bf16.mxu0 0
    %675 = vmatpush1.bf16.msra.mxu0 0
    %676 = vmatprep.subr.bf16.mxu0 0
    %677 = vmatpush1.bf16.msra.mxu0 0
    %678 = vmatprep.subr.bf16.mxu0 0
    %679 = vmatpush1.bf16.msra.mxu0 0
    %680 = vmatprep.subr.bf16.mxu0 0
    %681 = vmatpush1.bf16.msra.mxu0 0
    %682 = vmatprep.subr.bf16.mxu0 0
    %683 = vmatpush1.bf16.msra.mxu0 0
    %684 = vmatprep.subr.bf16.mxu0 0
    %685 = vmatpush1.bf16.msra.mxu0 0
    %686 = vmatprep.subr.bf16.mxu0 0
    %687 = vmatpush1.bf16.msra.mxu0 0
    %688 = vmatprep.subr.bf16.mxu0 0
    %689 = vmatpush1.bf16.msra.mxu0 0
    %690 = vmatprep.subr.bf16.mxu0 0
    %691 = vmatpush1.bf16.msra.mxu0 0
    %692 = vmatprep.mubr.bf16.mxu0 0
    %693 = vmatmul.mubr.bf16.gmra.mrb[0].mxu0 %v658
    %v694 = vpop.f32.mrb[0].mxu0
    %v695 = vadd.f32 0.0, %v694
    %v696 = vpop.f32.mrb[0].mxu0
    %v697 = vpop.f32.mrb[0].mxu0
    %v698 = vpop.f32.mrb[0].mxu0
    %699 = vdwg.mxu0
    %v700 = vadd.f32 %v652, %v695
    %v701 = vxor.u32 %v700, 2147483648
    %v702 = vmul.f32 %v701, 1.442695
    %v703 = vpow.pop %v702
    %v704 = vadd.f32 %v703, 1.0
    %v705 = vrcp.pop %v704
    %v706 = vmul.f32 1.0, %v705
    %v707 = vmul.f32 %v706, 2.0
    %v708 = vsub.f32 %v707, 1.0
    %v709 = vsel %vm64, %v708, %v706
    %v710 = vmul.f32 %v709, %v640
    %712 = vrot.lane.b32.xlu0 %v709, 64
    %v713 = vpop.permute.xlu0 %712
    %v715 = vmul.f32 %v709, %v713
    %717 = vrot.lane.b32.xlu0 %v715, 32
    %v718 = vpop.permute.xlu0 %717
    %v720 = vadd.f32 %v710, %v718
    %v721 = vtanh.pop %v720
    %723 = vrot.lane.b32.xlu0 %v721, 64
    %v724 = vpop.permute.xlu0 %723
    %v726 = vmul.f32 %v709, %v724
    %v727 = vld [vmem:[%s4] sm:$0x1]
    %v728 = vld [vmem:[#allocation2] sm:$0x1]
    %730 = vset.pattern.permute.xlu0 0
    %731 = vperm.xlu0 %730, %v728
    %v732 = vpop.permute.xlu0 %731
    %v734 = vlaneseq
    %v735 = vshrl.u32 %v734, 7
    %v736 = vsub.s32 0, %v735
    %v737 = vrot.slane %v732, %v736
    %739 = vrot.lane.b32.xlu0 %v726, 32
    %v740 = vpop.permute.xlu0 %739
    %v742 = vsel %vm96, %v727, 0
    %v744 = vsel %vm96, %v740, 0
    %746 = vmatprep.subr.mxu0 0.0
    %747 = vmatpush1.xpose.msra.mxu0 %v744
    %748 = vmatprep.subr.mxu0 0.0
    %749 = vmatpush1.xpose.msra.mxu0 0.0
    %750 = vmatprep.subr.mxu0 0.0
    %751 = vmatpush1.xpose.msra.mxu0 0.0
    %752 = vmatprep.subr.mxu0 0.0
    %753 = vmatpush1.xpose.msra.mxu0 0.0
    %754 = vmatprep.subr.mxu0 0.0
    %755 = vmatpush1.xpose.msra.mxu0 0.0
    %756 = vmatprep.subr.mxu0 0.0
    %757 = vmatpush1.xpose.msra.mxu0 0.0
    %758 = vmatprep.subr.mxu0 0.0
    %759 = vmatpush1.xpose.msra.mxu0 0.0
    %760 = vmatprep.subr.mxu0 0.0
    %761 = vmatpush1.xpose.msra.mxu0 0.0
    %762 = vmatprep.subr.mxu0 0.0
    %763 = vmatpush1.xpose.msra.mxu0 0.0
    %764 = vmatprep.subr.mxu0 0.0
    %765 = vmatpush1.xpose.msra.mxu0 0.0
    %766 = vmatprep.subr.mxu0 0.0
    %767 = vmatpush1.xpose.msra.mxu0 0.0
    %768 = vmatprep.subr.mxu0 0.0
    %769 = vmatpush1.xpose.msra.mxu0 0.0
    %770 = vmatprep.subr.mxu0 0.0
    %771 = vmatpush1.xpose.msra.mxu0 0.0
    %772 = vmatprep.subr.mxu0 0.0
    %773 = vmatpush1.xpose.msra.mxu0 0.0
    %774 = vmatprep.subr.mxu0 0.0
    %775 = vmatpush1.xpose.msra.mxu0 0.0
    %776 = vmatprep.subr.mxu0 0.0
    %777 = vmatpush1.xpose.msra.mxu0 0.0
    %778 = vmatprep.subr.mxu0 0.0
    %779 = vmatpush1.xpose.msra.mxu0 0.0
    %780 = vmatprep.subr.mxu0 0.0
    %781 = vmatpush1.xpose.msra.mxu0 0.0
    %782 = vmatprep.subr.mxu0 0.0
    %783 = vmatpush1.xpose.msra.mxu0 0.0
    %784 = vmatprep.subr.mxu0 0.0
    %785 = vmatpush1.xpose.msra.mxu0 0.0
    %786 = vmatprep.subr.mxu0 0.0
    %787 = vmatpush1.xpose.msra.mxu0 0.0
    %788 = vmatprep.subr.mxu0 0.0
    %789 = vmatpush1.xpose.msra.mxu0 0.0
    %790 = vmatprep.subr.mxu0 0.0
    %791 = vmatpush1.xpose.msra.mxu0 0.0
    %792 = vmatprep.subr.mxu0 0.0
    %793 = vmatpush1.xpose.msra.mxu0 0.0
    %794 = vmatprep.subr.mxu0 0.0
    %795 = vmatpush1.xpose.msra.mxu0 0.0
    %796 = vmatprep.subr.mxu0 0.0
    %797 = vmatpush1.xpose.msra.mxu0 0.0
    %798 = vmatprep.subr.mxu0 0.0
    %799 = vmatpush1.xpose.msra.mxu0 0.0
    %800 = vmatprep.subr.mxu0 0.0
    %801 = vmatpush1.xpose.msra.mxu0 0.0
    %802 = vmatprep.subr.mxu0 0.0
    %803 = vmatpush1.xpose.msra.mxu0 0.0
    %804 = vmatprep.subr.mxu0 0.0
    %805 = vmatpush1.xpose.msra.mxu0 0.0
    %806 = vmatprep.subr.mxu0 0.0
    %807 = vmatpush1.xpose.msra.mxu0 0.0
    %808 = vmatprep.subr.mxu0 0.0
    %809 = vmatpush1.xpose.msra.mxu0 0.0
    %810 = vmatprep.mubr.f32.mxu0 0.0
    %811 = vmatmul.mubr.f32.gmra.mrb[0].mxu0 %v742
    %v812 = vpop.f32.mrb[0].mxu0
    %v813 = vadd.f32 %v737, %v812
    %v814 = vpop.f32.mrb[0].mxu0
    %815 = vdwg.mxu0
    %vm816 = vcmask 57344
    %817 = vst.msk [vmem:[#allocation8] sm:$0x1] %vm816, %v813
    // Predicated region
    $region34: #{tpu_custom_call.1} parent=1 // pred_check
      _
    $region35: #{tpu_custom_call.1} parent=1 // pred_check_branch
      %819 = sbr.rel (0) target = $region37
    $region36: #{tpu_custom_call.1} parent=1 // pred_region
      %s821 = ssub.s32 16, 16
      %822 = vsyncadd [#allocation5], %s821
      %s824 = sshll.u32 [#allocation8], 4
      %s825 = int_to_ptr.vmem [resolvable:$true] %s824
      %827 = dma.vmem_to_hbm [thread:$0]  %s825, 16, %s6, [#allocation5]
    $region37: #{tpu_custom_call.1} parent=1 // pred_fallthru
      _
    // Predicated region
    $region38: #{tpu_custom_call.1} parent=1 // pred_check
      _
    $region39: #{tpu_custom_call.1} parent=1 // pred_check_branch
      %829 = sbr.rel (0) target = $region41
    $region40: #{tpu_custom_call.1} parent=1 // pred_region
      %830 = dma.done [#allocation5], 16
    $region41: #{tpu_custom_call.1} parent=1 // pred_fallthru
      _
    %831 = vsyncpa [#allocation4], 1
    %832 = vsyncpa [#allocation7], 1
    %833 = vsyncpa [#allocation5], 1

</llo_original>
